<compile_context>
chip_gen: v5e
topology: v5e:2x2
jax: 0.10.0
libtpu: 0.0.40
codegen_flags: <defaults>
</compile_context>

<pallas_src>
import jax
import jax.numpy as jnp
from jax.experimental import pallas as pl
from jax.experimental.pallas import tpu as pltpu


def _clip_fused_kernel(tok_ref, tproj_ref, tb_ref, x_ref, iw_ref, ib_ref,
                       txt_o_ref, img_o_ref, acc_ref):
    """Fused CLIP feature kernel.

    Grid: (batch tiles [parallel], K tiles of the flattened image [arbitrary]).
    Text path (tiny) runs once per batch tile at k == 0; image path accumulates
    across k into a VMEM f32 scratch and finalizes (L2 norm) at the last step.
    """
    k = pl.program_id(1)
    nk = pl.num_programs(1)

    @pl.when(k == 0)
    def _init_and_text():
        # Image bias folded into the accumulator init (frees the epilogue).
        acc_ref[...] = jnp.broadcast_to(ib_ref[...], acc_ref.shape)

        # ---- text path: mean-pool over seq == (bag-of-words counts @ folded
        # table) / T.  The projection txt_w is pre-folded into the table.
        Btile, T = tok_ref.shape
        V = tproj_ref.shape[0]
        tok = tok_ref[...]                                             # [Bt, T] int32
        vocab_ids = jax.lax.broadcasted_iota(jnp.int32, (Btile, V), 1)  # [Bt, V]
        counts = jnp.zeros((Btile, V), jnp.float32)
        for t in range(T):                                             # static unroll (T small)
            counts = counts + (tok[:, t:t + 1] == vocab_ids).astype(jnp.float32)
        # counts are integers <= T: exact in bf16. Scale by 1/T AFTER the
        # f32-accumulated matmul (exact for any T, one fewer [B,V] VPU mul).
        tf = jnp.dot(counts.astype(tproj_ref.dtype), tproj_ref[...],
                     preferred_element_type=jnp.float32)               # MXU, f32 acc
        tf = tf * (1.0 / T) + tb_ref[...]                              # [Bt, D] + [1, D]
        # eps only guards an all-zero row (same inf/NaN behavior as PyTorch otherwise)
        inv = jax.lax.rsqrt(jnp.sum(tf * tf, axis=-1, keepdims=True) + 1e-12)
        txt_o_ref[...] = (tf * inv).astype(txt_o_ref.dtype)

    # ---- image path: cast this f32 K-slice to bf16 in-register and accumulate
    # on the MXU (bf16 in, f32 acc).
    acc_ref[...] += jnp.dot(x_ref[...].astype(iw_ref.dtype), iw_ref[...],
                            preferred_element_type=jnp.float32)

    @pl.when(k == nk - 1)
    def _finalize_image():
        f = acc_ref[...]                                               # bias already included
        inv = jax.lax.rsqrt(jnp.sum(f * f, axis=-1, keepdims=True) + 1e-12)
        img_o_ref[...] = (f * inv).astype(img_o_ref.dtype)


def _choose_k_tiling(cin, cap):
    """Pick a lane-aligned K tile size. Returns (tk, padded_cin)."""
    if cin <= cap:
        return cin, cin                                  # single K step, full block
    top256 = (min(cap, cin) // 256) * 256
    for t in range(top256, 0, -256):                     # prefer 256-aligned (MXU width)
        if cin % t == 0:
            return t, cin
    top128 = (min(cap, cin) // 128) * 128
    for t in range(top128, 0, -128):                     # fall back to 128-aligned
        if cin % t == 0:
            return t, cin
    # TODO(synk): replace zero-padding with a masked tail K step.
    tk = top256 if top256 > 0 else 256
    return tk, -(-cin // tk) * tk                        # zero-pad K to a multiple of tk


def clip_encode(tok, embed_proj, txt_b, x_img, img_w, img_b, *, tk_cap=8192):
    """Single pallas_call producing both L2-normalized feature matrices."""
    B, T = tok.shape
    V, D = embed_proj.shape
    B2, Cin = x_img.shape
    assert B == B2 and img_w.shape == (Cin, D)

    # Batch tiling: 8-row tiles keep (8,128) sublane alignment.  The leading
    # grid axis is 'parallel', so v7x's two TensorCores split batch tiles
    # (each computing both modalities for its rows) once B >= 16; at B <= 8
    # it collapses to a single tile and costs nothing on v5e/v6e.
    tb = 8 if (B % 8 == 0 and B > 8) else B
    nb = B // tb

    # K-tile the flattened image dim with the largest lane-aligned tile that
    # fits VMEM (fewer, bigger K steps -> less per-step pipeline overhead).
    tk, cin_pad = _choose_k_tiling(Cin, tk_cap)
    if cin_pad != Cin:
        x_img = jnp.pad(x_img, ((0, 0), (0, cin_pad - Cin)))
        img_w = jnp.pad(img_w, ((0, cin_pad - Cin), (0, 0)))
    nk = cin_pad // tk

    # TODO(synk): at CLIP-scale vocab, single-buffer the resident embed_proj
    # block (pipeline_mode=pl.Buffered(1)) or switch the text path to a
    # scalar-prefetched row gather (PrefetchScalarGridSpec) so the V x D table
    # never has to be double-buffered in VMEM.
    txt_out, img_out = pl.pallas_call(
        _clip_fused_kernel,
        out_shape=(jax.ShapeDtypeStruct((B, D), jnp.float32),
                   jax.ShapeDtypeStruct((B, D), jnp.float32)),
        grid=(nb, nk),
        in_specs=[
            pl.BlockSpec((tb, T), lambda b, k: (b, 0)),    # token ids (per batch tile)
            pl.BlockSpec((V, D), lambda b, k: (0, 0)),     # folded embed @ txt_w (bf16, resident)
            pl.BlockSpec((1, D), lambda b, k: (0, 0)),     # text bias (f32)
            pl.BlockSpec((tb, tk), lambda b, k: (b, k)),   # image activations, K-slice (f32)
            pl.BlockSpec((tk, D), lambda b, k: (k, 0)),    # image weights, K-slice (bf16)
            pl.BlockSpec((1, D), lambda b, k: (0, 0)),     # image bias (f32)
        ],
        out_specs=(pl.BlockSpec((tb, D), lambda b, k: (b, 0)),
                   pl.BlockSpec((tb, D), lambda b, k: (b, 0))),
        scratch_shapes=[pltpu.VMEM((tb, D), jnp.float32)],  # image accumulator
        compiler_params=pltpu.CompilerParams(
            dimension_semantics=("parallel", "arbitrary"),   # batch parallel, K reduction
            vmem_limit_bytes=64 * 1024 * 1024),
    )(tok, embed_proj, txt_b.reshape(1, D), x_img, img_w, img_b.reshape(1, D))
    return txt_out, img_out


class CLIPWrapperPallas:
    """JAX/Pallas equivalent of the PyTorch CLIPWrapper with synthetic encoders."""

    def __init__(self, vocab=32, seq=16, d_txt=64, c=4, h=16, w=16, d=128):
        key = jax.random.PRNGKey(0)
        k_emb, k_tw, k_tb, k_iw, k_ib = jax.random.split(key, 5)
        # f32 "master" params kept for reference checking.
        self.embed = 0.02 * jax.random.normal(k_emb, (vocab, d_txt), jnp.float32)
        self.txt_w = 0.02 * jax.random.normal(k_tw, (d_txt, d), jnp.float32)
        self.txt_b = 0.02 * jax.random.normal(k_tb, (d,), jnp.float32)
        # Fold the text projection into the embedding table once, offline:
        #   mean_t(embed[tok_t]) @ W  ==  mean_t((embed @ W)[tok_t])   (linearity)
        self.embed_proj = (self.embed @ self.txt_w).astype(jnp.bfloat16)  # [V, D]
        self.img_w = (0.02 * jax.random.normal(
            k_iw, (c * h * w, d), jnp.float32)).astype(jnp.bfloat16)
        self.img_b = 0.02 * jax.random.normal(k_ib, (d,), jnp.float32)
        # logit_scale = log(1/0.07), a learnable scalar in the original module
        self.logit_scale = jnp.asarray(jnp.log(1.0 / 0.07), jnp.float32)

    def __call__(self, text, images):
        B = images.shape[0]
        flat = images.reshape(B, -1)                      # layout glue only; cast to bf16 is in-kernel
        txt_f, img_f = clip_encode(text.astype(jnp.int32), self.embed_proj,
                                   self.txt_b, flat, self.img_w, self.img_b)
        # scalar exp — no kernel needed
        return txt_f, img_f, jnp.exp(self.logit_scale)


if __name__ == "__main__":
    B, T, VOCAB = 8, 16, 32
    C, H, W = 4, 16, 16

    model = CLIPWrapperPallas(vocab=VOCAB, seq=T, c=C, h=H, w=W)

    key = jax.random.PRNGKey(0)
    k_txt, k_img = jax.random.split(key)
    text = jax.random.randint(k_txt, (B, T), 0, VOCAB, dtype=jnp.int32)
    images = jax.random.normal(k_img, (B, C, H, W), jnp.float32)  # NCHW

    fwd = jax.jit(model.__call__)
    txt_f, img_f, scale = fwd(text, images)
    jax.block_until_ready((txt_f, img_f, scale))

    # ---- invariants: shapes, unit norms, logit scale ----
    assert txt_f.shape == (B, 128) and img_f.shape == (B, 128)
    assert jnp.allclose(jnp.linalg.norm(txt_f, axis=-1), 1.0, atol=1e-4)
    assert jnp.allclose(jnp.linalg.norm(img_f, axis=-1), 1.0, atol=1e-4)
    assert jnp.allclose(scale, 1.0 / 0.07, rtol=1e-5)

    # ---- pure-JAX f32 reference (bf16 kernel path -> loose tolerance) ----
    ref_pooled = jnp.mean(jnp.take(model.embed, text, axis=0), axis=1)
    ref_txt = ref_pooled @ model.txt_w + model.txt_b
    ref_txt = ref_txt / jnp.linalg.norm(ref_txt, axis=-1, keepdims=True)
    ref_imf = images.reshape(B, -1) @ model.img_w.astype(jnp.float32) + model.img_b
    ref_img = ref_imf / jnp.linalg.norm(ref_imf, axis=-1, keepdims=True)
    assert jnp.allclose(txt_f, ref_txt, atol=2e-2)
    assert jnp.allclose(img_f, ref_img, atol=2e-2)

    print("KERNEL_OK")
</pallas_src>

<mosaic_0001>
module attributes {stable_mosaic.version = 11 : i64} {
  func.func @_clip_fused_kernel(%arg0: i32, %arg1: i32, %arg2: memref<8x16xi32, #tpu.memory_space<vmem>>, %arg3: memref<32x128xbf16, #tpu.memory_space<vmem>>, %arg4: memref<1x128xf32, #tpu.memory_space<vmem>>, %arg5: memref<8x1024xf32, #tpu.memory_space<vmem>>, %arg6: memref<1024x128xbf16, #tpu.memory_space<vmem>>, %arg7: memref<1x128xf32, #tpu.memory_space<vmem>>, %arg8: memref<8x128xf32, #tpu.memory_space<vmem>>, %arg9: memref<8x128xf32, #tpu.memory_space<vmem>>, %arg10: memref<8x128xf32, #tpu.memory_space<vmem>>) attributes {dimension_semantics = [#tpu.dimension_semantics<parallel>, #tpu.dimension_semantics<arbitrary>], iteration_bounds = array<i64: 1, 1>, scalar_prefetch = 0 : i64, scratch_operands = 1 : i64, tpu.core_type = #tpu.core_type<tc>, window_params = [{transform_indices = @transform_0, window_bounds = array<i64: 8, 16>}, {pipeline_mode = #tpu.pipeline_mode<synchronous>, transform_indices = @transform_1, window_bounds = array<i64: 32, 128>}, {pipeline_mode = #tpu.pipeline_mode<synchronous>, transform_indices = @transform_2, window_bounds = array<i64: 1, 128>}, {transform_indices = @transform_3, window_bounds = array<i64: 8, 1024>}, {transform_indices = @transform_4, window_bounds = array<i64: 1024, 128>}, {pipeline_mode = #tpu.pipeline_mode<synchronous>, transform_indices = @transform_5, window_bounds = array<i64: 1, 128>}, {transform_indices = @transform_6, window_bounds = array<i64: 8, 128>}, {transform_indices = @transform_7, window_bounds = array<i64: 8, 128>}]} {
    %c0_i32 = arith.constant 0 : i32
    %0 = arith.cmpi eq, %arg1, %c0_i32 : i32
    %1 = arith.extui %0 : i1 to i32
    %c0_i32_0 = arith.constant 0 : i32
    %2 = arith.cmpi ne, %1, %c0_i32_0 : i32
    scf.if %2 {
      %c0_10 = arith.constant 0 : index
      %c0_11 = arith.constant 0 : index
      %13 = vector.load %arg7[%c0_10, %c0_11] : memref<1x128xf32, #tpu.memory_space<vmem>>, vector<1x128xf32>
      %14 = vector.shape_cast %13 : vector<1x128xf32> to vector<1x128xf32>
      %15 = vector.broadcast %14 : vector<1x128xf32> to vector<8x128xf32>
      %c0_12 = arith.constant 0 : index
      %c0_13 = arith.constant 0 : index
      %16 = vector.load %arg10[%c0_12, %c0_13] : memref<8x128xf32, #tpu.memory_space<vmem>>, vector<8x128xf32>
      tpu.vector_store %arg10[%c0_12, %c0_13], %15 {strides = array<i32>} : memref<8x128xf32, #tpu.memory_space<vmem>>, vector<8x128xf32>,
      %c0_14 = arith.constant 0 : index
      %c0_15 = arith.constant 0 : index
      %17 = vector.load %arg2[%c0_14, %c0_15] : memref<8x16xi32, #tpu.memory_space<vmem>>, vector<8x16xi32>
      %18 = tpu.iota {dimensions = array<i32: 1>} : vector<8x32xi32>
      %cst_16 = arith.constant 0.000000e+00 : f32
      %19 = vector.broadcast %cst_16 : f32 to vector<8x32xf32>
      %20 = vector.extract_strided_slice %17 {offsets = [0, 0], sizes = [8, 1], strides = [1, 1]} : vector<8x16xi32> to vector<8x1xi32>
      %21 = vector.broadcast %20 : vector<8x1xi32> to vector<8x32xi32>
      %22 = arith.cmpi eq, %21, %18 : vector<8x32xi32>
      %23 = arith.extui %22 : vector<8x32xi1> to vector<8x32xi32>
      %24 = arith.sitofp %23 : vector<8x32xi32> to vector<8x32xf32>
      %25 = arith.addf %19, %24 : vector<8x32xf32>
      %26 = vector.extract_strided_slice %17 {offsets = [0, 1], sizes = [8, 1], strides = [1, 1]} : vector<8x16xi32> to vector<8x1xi32>
      %27 = vector.broadcast %26 : vector<8x1xi32> to vector<8x32xi32>
      %28 = arith.cmpi eq, %27, %18 : vector<8x32xi32>
      %29 = arith.extui %28 : vector<8x32xi1> to vector<8x32xi32>
      %30 = arith.sitofp %29 : vector<8x32xi32> to vector<8x32xf32>
      %31 = arith.addf %25, %30 : vector<8x32xf32>
      %32 = vector.extract_strided_slice %17 {offsets = [0, 2], sizes = [8, 1], strides = [1, 1]} : vector<8x16xi32> to vector<8x1xi32>
      %33 = vector.broadcast %32 : vector<8x1xi32> to vector<8x32xi32>
      %34 = arith.cmpi eq, %33, %18 : vector<8x32xi32>
      %35 = arith.extui %34 : vector<8x32xi1> to vector<8x32xi32>
      %36 = arith.sitofp %35 : vector<8x32xi32> to vector<8x32xf32>
      %37 = arith.addf %31, %36 : vector<8x32xf32>
      %38 = vector.extract_strided_slice %17 {offsets = [0, 3], sizes = [8, 1], strides = [1, 1]} : vector<8x16xi32> to vector<8x1xi32>
      %39 = vector.broadcast %38 : vector<8x1xi32> to vector<8x32xi32>
      %40 = arith.cmpi eq, %39, %18 : vector<8x32xi32>
      %41 = arith.extui %40 : vector<8x32xi1> to vector<8x32xi32>
      %42 = arith.sitofp %41 : vector<8x32xi32> to vector<8x32xf32>
      %43 = arith.addf %37, %42 : vector<8x32xf32>
      %44 = vector.extract_strided_slice %17 {offsets = [0, 4], sizes = [8, 1], strides = [1, 1]} : vector<8x16xi32> to vector<8x1xi32>
      %45 = vector.broadcast %44 : vector<8x1xi32> to vector<8x32xi32>
      %46 = arith.cmpi eq, %45, %18 : vector<8x32xi32>
      %47 = arith.extui %46 : vector<8x32xi1> to vector<8x32xi32>
      %48 = arith.sitofp %47 : vector<8x32xi32> to vector<8x32xf32>
      %49 = arith.addf %43, %48 : vector<8x32xf32>
      %50 = vector.extract_strided_slice %17 {offsets = [0, 5], sizes = [8, 1], strides = [1, 1]} : vector<8x16xi32> to vector<8x1xi32>
      %51 = vector.broadcast %50 : vector<8x1xi32> to vector<8x32xi32>
      %52 = arith.cmpi eq, %51, %18 : vector<8x32xi32>
      %53 = arith.extui %52 : vector<8x32xi1> to vector<8x32xi32>
      %54 = arith.sitofp %53 : vector<8x32xi32> to vector<8x32xf32>
      %55 = arith.addf %49, %54 : vector<8x32xf32>
      %56 = vector.extract_strided_slice %17 {offsets = [0, 6], sizes = [8, 1], strides = [1, 1]} : vector<8x16xi32> to vector<8x1xi32>
      %57 = vector.broadcast %56 : vector<8x1xi32> to vector<8x32xi32>
      %58 = arith.cmpi eq, %57, %18 : vector<8x32xi32>
      %59 = arith.extui %58 : vector<8x32xi1> to vector<8x32xi32>
      %60 = arith.sitofp %59 : vector<8x32xi32> to vector<8x32xf32>
      %61 = arith.addf %55, %60 : vector<8x32xf32>
      %62 = vector.extract_strided_slice %17 {offsets = [0, 7], sizes = [8, 1], strides = [1, 1]} : vector<8x16xi32> to vector<8x1xi32>
      %63 = vector.broadcast %62 : vector<8x1xi32> to vector<8x32xi32>
      %64 = arith.cmpi eq, %63, %18 : vector<8x32xi32>
      %65 = arith.extui %64 : vector<8x32xi1> to vector<8x32xi32>
      %66 = arith.sitofp %65 : vector<8x32xi32> to vector<8x32xf32>
      %67 = arith.addf %61, %66 : vector<8x32xf32>
      %68 = vector.extract_strided_slice %17 {offsets = [0, 8], sizes = [8, 1], strides = [1, 1]} : vector<8x16xi32> to vector<8x1xi32>
      %69 = vector.broadcast %68 : vector<8x1xi32> to vector<8x32xi32>
      %70 = arith.cmpi eq, %69, %18 : vector<8x32xi32>
      %71 = arith.extui %70 : vector<8x32xi1> to vector<8x32xi32>
      %72 = arith.sitofp %71 : vector<8x32xi32> to vector<8x32xf32>
      %73 = arith.addf %67, %72 : vector<8x32xf32>
      %74 = vector.extract_strided_slice %17 {offsets = [0, 9], sizes = [8, 1], strides = [1, 1]} : vector<8x16xi32> to vector<8x1xi32>
      %75 = vector.broadcast %74 : vector<8x1xi32> to vector<8x32xi32>
      %76 = arith.cmpi eq, %75, %18 : vector<8x32xi32>
      %77 = arith.extui %76 : vector<8x32xi1> to vector<8x32xi32>
      %78 = arith.sitofp %77 : vector<8x32xi32> to vector<8x32xf32>
      %79 = arith.addf %73, %78 : vector<8x32xf32>
      %80 = vector.extract_strided_slice %17 {offsets = [0, 10], sizes = [8, 1], strides = [1, 1]} : vector<8x16xi32> to vector<8x1xi32>
      %81 = vector.broadcast %80 : vector<8x1xi32> to vector<8x32xi32>
      %82 = arith.cmpi eq, %81, %18 : vector<8x32xi32>
      %83 = arith.extui %82 : vector<8x32xi1> to vector<8x32xi32>
      %84 = arith.sitofp %83 : vector<8x32xi32> to vector<8x32xf32>
      %85 = arith.addf %79, %84 : vector<8x32xf32>
      %86 = vector.extract_strided_slice %17 {offsets = [0, 11], sizes = [8, 1], strides = [1, 1]} : vector<8x16xi32> to vector<8x1xi32>
      %87 = vector.broadcast %86 : vector<8x1xi32> to vector<8x32xi32>
      %88 = arith.cmpi eq, %87, %18 : vector<8x32xi32>
      %89 = arith.extui %88 : vector<8x32xi1> to vector<8x32xi32>
      %90 = arith.sitofp %89 : vector<8x32xi32> to vector<8x32xf32>
      %91 = arith.addf %85, %90 : vector<8x32xf32>
      %92 = vector.extract_strided_slice %17 {offsets = [0, 12], sizes = [8, 1], strides = [1, 1]} : vector<8x16xi32> to vector<8x1xi32>
      %93 = vector.broadcast %92 : vector<8x1xi32> to vector<8x32xi32>
      %94 = arith.cmpi eq, %93, %18 : vector<8x32xi32>
      %95 = arith.extui %94 : vector<8x32xi1> to vector<8x32xi32>
      %96 = arith.sitofp %95 : vector<8x32xi32> to vector<8x32xf32>
      %97 = arith.addf %91, %96 : vector<8x32xf32>
      %98 = vector.extract_strided_slice %17 {offsets = [0, 13], sizes = [8, 1], strides = [1, 1]} : vector<8x16xi32> to vector<8x1xi32>
      %99 = vector.broadcast %98 : vector<8x1xi32> to vector<8x32xi32>
      %100 = arith.cmpi eq, %99, %18 : vector<8x32xi32>
      %101 = arith.extui %100 : vector<8x32xi1> to vector<8x32xi32>
      %102 = arith.sitofp %101 : vector<8x32xi32> to vector<8x32xf32>
      %103 = arith.addf %97, %102 : vector<8x32xf32>
      %104 = vector.extract_strided_slice %17 {offsets = [0, 14], sizes = [8, 1], strides = [1, 1]} : vector<8x16xi32> to vector<8x1xi32>
      %105 = vector.broadcast %104 : vector<8x1xi32> to vector<8x32xi32>
      %106 = arith.cmpi eq, %105, %18 : vector<8x32xi32>
      %107 = arith.extui %106 : vector<8x32xi1> to vector<8x32xi32>
      %108 = arith.sitofp %107 : vector<8x32xi32> to vector<8x32xf32>
      %109 = arith.addf %103, %108 : vector<8x32xf32>
      %110 = vector.extract_strided_slice %17 {offsets = [0, 15], sizes = [8, 1], strides = [1, 1]} : vector<8x16xi32> to vector<8x1xi32>
      %111 = vector.broadcast %110 : vector<8x1xi32> to vector<8x32xi32>
      %112 = arith.cmpi eq, %111, %18 : vector<8x32xi32>
      %113 = arith.extui %112 : vector<8x32xi1> to vector<8x32xi32>
      %114 = arith.sitofp %113 : vector<8x32xi32> to vector<8x32xf32>
      %115 = arith.addf %109, %114 : vector<8x32xf32>
      %116 = arith.truncf %115 : vector<8x32xf32> to vector<8x32xbf16>
      %c0_17 = arith.constant 0 : index
      %c0_18 = arith.constant 0 : index
      %117 = vector.load %arg3[%c0_17, %c0_18] : memref<32x128xbf16, #tpu.memory_space<vmem>>, vector<32x128xbf16>
      %cst_19 = arith.constant dense<0.000000e+00> : vector<8x128xf32>
      %118 = tpu.matmul %116, %117, %cst_19 {dimension_numbers = #tpu.dot_dimension_numbers<[1], [0], [0], [1], [0, 0, 1, 1], [], []>} : vector<8x32xbf16>, vector<32x128xbf16>, vector<8x128xf32> -> vector<8x128xf32>
      %cst_20 = arith.constant 6.250000e-02 : f32
      %119 = vector.broadcast %cst_20 : f32 to vector<8x128xf32>
      %120 = arith.mulf %118, %119 : vector<8x128xf32>
      %c0_21 = arith.constant 0 : index
      %c0_22 = arith.constant 0 : index
      %121 = vector.load %arg4[%c0_21, %c0_22] : memref<1x128xf32, #tpu.memory_space<vmem>>, vector<1x128xf32>
      %122 = vector.broadcast %121 : vector<1x128xf32> to vector<8x128xf32>
      %123 = arith.addf %120, %122 : vector<8x128xf32>
      %124 = arith.mulf %123, %123 : vector<8x128xf32>
      %cst_23 = arith.constant dense<0.000000e+00> : vector<8xf32>
      %125 = vector.multi_reduction <add>, %124, %cst_23 [1] : vector<8x128xf32> to vector<8xf32>
      %126 = vector.shape_cast %125 : vector<8xf32> to vector<8x1xf32>
      %cst_24 = arith.constant 9.99999996E-13 : f32
      %127 = vector.broadcast %cst_24 : f32 to vector<8x1xf32>
      %128 = arith.addf %126, %127 : vector<8x1xf32>
      %129 = math.rsqrt %128 : vector<8x1xf32>
      %130 = vector.broadcast %129 : vector<8x1xf32> to vector<8x128xf32>
      %131 = arith.mulf %123, %130 : vector<8x128xf32>
      %c0_25 = arith.constant 0 : index
      %c0_26 = arith.constant 0 : index
      %132 = vector.load %arg8[%c0_25, %c0_26] : memref<8x128xf32, #tpu.memory_space<vmem>>, vector<8x128xf32>
      tpu.vector_store %arg8[%c0_25, %c0_26], %131 {strides = array<i32>} : memref<8x128xf32, #tpu.memory_space<vmem>>, vector<8x128xf32>,
    } else {
    }
    %c0 = arith.constant 0 : index
    %c0_1 = arith.constant 0 : index
    %3 = vector.load %arg10[%c0, %c0_1] : memref<8x128xf32, #tpu.memory_space<vmem>>, vector<8x128xf32>
    %c0_2 = arith.constant 0 : index
    %c0_3 = arith.constant 0 : index
    %4 = vector.load %arg5[%c0_2, %c0_3] : memref<8x1024xf32, #tpu.memory_space<vmem>>, vector<8x1024xf32>
    %5 = arith.truncf %4 : vector<8x1024xf32> to vector<8x1024xbf16>
    %c0_4 = arith.constant 0 : index
    %c0_5 = arith.constant 0 : index
    %6 = vector.load %arg6[%c0_4, %c0_5] : memref<1024x128xbf16, #tpu.memory_space<vmem>>, vector<1024x128xbf16>
    %cst = arith.constant dense<0.000000e+00> : vector<8x128xf32>
    %7 = tpu.matmul %5, %6, %cst {dimension_numbers = #tpu.dot_dimension_numbers<[1], [0], [0], [1], [0, 0, 1, 1], [], []>} : vector<8x1024xbf16>, vector<1024x128xbf16>, vector<8x128xf32> -> vector<8x128xf32>
    %8 = arith.addf %3, %7 : vector<8x128xf32>
    %c0_6 = arith.constant 0 : index
    %c0_7 = arith.constant 0 : index
    %9 = vector.load %arg10[%c0_6, %c0_7] : memref<8x128xf32, #tpu.memory_space<vmem>>, vector<8x128xf32>
    tpu.vector_store %arg10[%c0_6, %c0_7], %8 {strides = array<i32>} : memref<8x128xf32, #tpu.memory_space<vmem>>, vector<8x128xf32>,
    %c0_i32_8 = arith.constant 0 : i32
    %10 = arith.cmpi eq, %arg1, %c0_i32_8 : i32
    %11 = arith.extui %10 : i1 to i32
    %c0_i32_9 = arith.constant 0 : i32
    %12 = arith.cmpi ne, %11, %c0_i32_9 : i32
    scf.if %12 {
      %c0_10 = arith.constant 0 : index
      %c0_11 = arith.constant 0 : index
      %13 = vector.load %arg10[%c0_10, %c0_11] : memref<8x128xf32, #tpu.memory_space<vmem>>, vector<8x128xf32>
      %14 = arith.mulf %13, %13 : vector<8x128xf32>
      %cst_12 = arith.constant dense<0.000000e+00> : vector<8xf32>
      %15 = vector.multi_reduction <add>, %14, %cst_12 [1] : vector<8x128xf32> to vector<8xf32>
      %16 = vector.shape_cast %15 : vector<8xf32> to vector<8x1xf32>
      %cst_13 = arith.constant 9.99999996E-13 : f32
      %17 = vector.broadcast %cst_13 : f32 to vector<8x1xf32>
      %18 = arith.addf %16, %17 : vector<8x1xf32>
      %19 = math.rsqrt %18 : vector<8x1xf32>
      %20 = vector.broadcast %19 : vector<8x1xf32> to vector<8x128xf32>
      %21 = arith.mulf %13, %20 : vector<8x128xf32>
      %c0_14 = arith.constant 0 : index
      %c0_15 = arith.constant 0 : index
      %22 = vector.load %arg9[%c0_14, %c0_15] : memref<8x128xf32, #tpu.memory_space<vmem>>, vector<8x128xf32>
      tpu.vector_store %arg9[%c0_14, %c0_15], %21 {strides = array<i32>} : memref<8x128xf32, #tpu.memory_space<vmem>>, vector<8x128xf32>,
    } else {
    }
    return
  }
  func.func @transform_0(%arg0: i32, %arg1: i32) -> (i32, i32) {
    %c0_i32 = arith.constant 0 : i32
    %c0_i32_0 = arith.constant 0 : i32
    return %arg0, %c0_i32 : i32, i32
  }
  func.func @transform_1(%arg0: i32, %arg1: i32) -> (i32, i32) {
    %c0_i32 = arith.constant 0 : i32
    %c0_i32_0 = arith.constant 0 : i32
    %c0_i32_1 = arith.constant 0 : i32
    return %c0_i32, %c0_i32_0 : i32, i32
  }
  func.func @transform_2(%arg0: i32, %arg1: i32) -> (i32, i32) {
    %c0_i32 = arith.constant 0 : i32
    %c0_i32_0 = arith.constant 0 : i32
    %c0_i32_1 = arith.constant 0 : i32
    return %c0_i32, %c0_i32_0 : i32, i32
  }
  func.func @transform_3(%arg0: i32, %arg1: i32) -> (i32, i32) {
    %c0_i32 = arith.constant 0 : i32
    return %arg0, %arg1 : i32, i32
  }
  func.func @transform_4(%arg0: i32, %arg1: i32) -> (i32, i32) {
    %c0_i32 = arith.constant 0 : i32
    %c0_i32_0 = arith.constant 0 : i32
    return %arg1, %c0_i32 : i32, i32
  }
  func.func @transform_5(%arg0: i32, %arg1: i32) -> (i32, i32) {
    %c0_i32 = arith.constant 0 : i32
    %c0_i32_0 = arith.constant 0 : i32
    %c0_i32_1 = arith.constant 0 : i32
    return %c0_i32, %c0_i32_0 : i32, i32
  }
  func.func @transform_6(%arg0: i32, %arg1: i32) -> (i32, i32) {
    %c0_i32 = arith.constant 0 : i32
    %c0_i32_0 = arith.constant 0 : i32
    return %arg0, %c0_i32 : i32, i32
  }
  func.func @transform_7(%arg0: i32, %arg1: i32) -> (i32, i32) {
    %c0_i32 = arith.constant 0 : i32
    %c0_i32_0 = arith.constant 0 : i32
    return %arg0, %c0_i32 : i32, i32
  }
}

</mosaic_0001>

<llo_original>
// kernel: a_call__.1
$region0: #{a_call__.1}
  #allocation0 [shape = 'u32[]', space=smem, size = 0x4, offset = 0x4, fixed_abs, tag = 'smem constant byte address 0x4 - core index']
  #allocation1 [shape = 'u32[72,128]{1,0:T(1,128)}', space=vmem, size = 0x9000, scoped, tag = 'internal scratch']
  #allocation2 [shape = 'f32[8,128]{1,0:T(8,128)}', space=vmem, size = 0x1000, scoped, tag = 'scratch operand']
  %s0 = inlined_call_operand.vmem [shape: s32[8,16], index: 0, kind: input, shape index: {}]
  %s1 = inlined_call_operand.vmem [shape: bf16[32,128], index: 1, kind: input, shape index: {}]
  %s2 = inlined_call_operand.vmem [shape: f32[1,128], index: 2, kind: input, shape index: {}]
  %s3 = inlined_call_operand.vmem [shape: f32[8,1024], index: 3, kind: input, shape index: {}]
  %s4 = inlined_call_operand.vmem [shape: bf16[1024,128], index: 4, kind: input, shape index: {}]
  %s5 = inlined_call_operand.vmem [shape: f32[1,128], index: 5, kind: input, shape index: {}]
  %s6 = inlined_call_operand.hbm [shape: f32[8,128], index: 6, kind: output, shape index: {0}]
  %s7 = inlined_call_operand.hbm [shape: f32[8,128], index: 7, kind: output, shape index: {1}]
  %8 = xla_tuple %s6, %s7
  %s9 = sld [smem:[#allocation0]]
  $region50: #{a_call__.1} parent=0
    _
  %s11 = ssub.s32 1, %s9
  %s12 = scalar_select 0, %s11, %s9
  $region1: #{a_call__.1} parent=0
    #allocation3 [shape = 'u8[4096]{0}', space=vmem, size = 0x1000, scoped, tag = 'output window, operand 0, single buffered']
    #allocation4 [shape = 's32[1]{0}', space=sflag, size = 0x4, scoped, tag = 'scoped memory for a_call__.1']
    #allocation5 [shape = 'u8[4096]{0}', space=vmem, size = 0x1000, scoped, tag = 'output window, operand 1, single buffered']
    #allocation6 [shape = 's32[1]{0}', space=sflag, size = 0x4, scoped, tag = 'scoped memory for a_call__.1']
    %13 = vsyncpa [#allocation4], 0
    %14 = vsyncpa [#allocation6], 0
    // Predicated region
    $region2: #{a_call__.1} parent=1 // pred_check
      _
    $region3: #{a_call__.1} parent=1 // pred_check_branch
      %16 = sbr.rel (0) target = $region5
    $region4: #{a_call__.1} parent=1 // pred_region
      _
    $region5: #{a_call__.1} parent=1 // pred_fallthru
      _
    // Predicated region
    $region6: #{a_call__.1} parent=1 // pred_check
      _
    $region7: #{a_call__.1} parent=1 // pred_check_branch
      %18 = sbr.rel (0) target = $region9
    $region8: #{a_call__.1} parent=1 // pred_region
      _
    $region9: #{a_call__.1} parent=1 // pred_fallthru
      _
    // Predicated region
    $region10: #{a_call__.1} parent=1 // pred_check
      _
    $region11: #{a_call__.1} parent=1 // pred_check_branch
      %20 = sbr.rel (0) target = $region13
    $region12: #{a_call__.1} parent=1 // pred_region
      _
    $region13: #{a_call__.1} parent=1 // pred_fallthru
      _
    // Predicated region
    $region14: #{a_call__.1} parent=1 // pred_check
      _
    $region15: #{a_call__.1} parent=1 // pred_check_branch
      %22 = sbr.rel (0) target = $region17
    $region16: #{a_call__.1} parent=1 // pred_region
      _
    $region17: #{a_call__.1} parent=1 // pred_fallthru
      _
    // Predicated region
    $region18: #{a_call__.1} parent=1 // pred_check
      _
    $region19: #{a_call__.1} parent=1 // pred_check_branch
      %24 = sbr.rel (0) target = $region21
    $region20: #{a_call__.1} parent=1 // pred_region
      _
    $region21: #{a_call__.1} parent=1 // pred_fallthru
      _
    // Predicated region
    $region22: #{a_call__.1} parent=1 // pred_check
      _
    $region23: #{a_call__.1} parent=1 // pred_check_branch
      %26 = sbr.rel (0) target = $region25
    $region24: #{a_call__.1} parent=1 // pred_region
      _
    $region25: #{a_call__.1} parent=1 // pred_fallthru
      _
    %p28 = scmp.eq.s32.totalorder 0, 0
    // Predicated region
    $region26: #{a_call__.1} parent=1 // pred_check
      %p29 = pneg %p28
    $region27: #{a_call__.1} parent=1 // pred_check_branch
      %31 = sbr.rel (%p29) target = $region29
    $region28: #{a_call__.1} parent=1 // pred_region
      %v32 = vld [vmem:[%s5] sm:$0x1]
      %v34 = vperm.slane %v32, 0
      %36 = vst [vmem:[#allocation2] sm:$0xff] %v34
      %v37 = vld [vmem:[%s0] sm:$0xff]
      %v38 = vlaneseq
      %v39 = vand.u32 %v38, 127
      %40 = vset.pattern.permute.xlu0 0
      %41 = vperm.xlu0 %40, %v37
      %v42 = vpop.permute.xlu0 %41
      %vm43 = vcmp.eq.s32.totalorder %v42, %v39
      %v44 = vsel %vm43, 1, 0
      %v45 = vcvt.s32.f32 %v44
      %v46 = vadd.f32 %v45, 0.0
      %47 = vset.pattern.permute.xlu0 1
      %48 = vperm.xlu0 %47, %v37
      %v49 = vpop.permute.xlu0 %48
      %vm50 = vcmp.eq.s32.totalorder %v49, %v39
      %v51 = vsel %vm50, 1, 0
      %v52 = vcvt.s32.f32 %v51
      %v53 = vadd.f32 %v46, %v52
      %54 = vset.pattern.permute.xlu0 2
      %55 = vperm.xlu0 %54, %v37
      %v56 = vpop.permute.xlu0 %55
      %vm57 = vcmp.eq.s32.totalorder %v56, %v39
      %v58 = vsel %vm57, 1, 0
      %v59 = vcvt.s32.f32 %v58
      %v60 = vadd.f32 %v53, %v59
      %61 = vset.pattern.permute.xlu0 3
      %62 = vperm.xlu0 %61, %v37
      %v63 = vpop.permute.xlu0 %62
      %vm64 = vcmp.eq.s32.totalorder %v63, %v39
      %v65 = vsel %vm64, 1, 0
      %v66 = vcvt.s32.f32 %v65
      %v67 = vadd.f32 %v60, %v66
      %68 = vset.pattern.permute.xlu0 4
      %69 = vperm.xlu0 %68, %v37
      %v70 = vpop.permute.xlu0 %69
      %vm71 = vcmp.eq.s32.totalorder %v70, %v39
      %v72 = vsel %vm71, 1, 0
      %v73 = vcvt.s32.f32 %v72
      %v74 = vadd.f32 %v67, %v73
      %75 = vset.pattern.permute.xlu0 5
      %76 = vperm.xlu0 %75, %v37
      %v77 = vpop.permute.xlu0 %76
      %vm78 = vcmp.eq.s32.totalorder %v77, %v39
      %v79 = vsel %vm78, 1, 0
      %v80 = vcvt.s32.f32 %v79
      %v81 = vadd.f32 %v74, %v80
      %82 = vset.pattern.permute.xlu0 6
      %83 = vperm.xlu0 %82, %v37
      %v84 = vpop.permute.xlu0 %83
      %vm85 = vcmp.eq.s32.totalorder %v84, %v39
      %v86 = vsel %vm85, 1, 0
      %v87 = vcvt.s32.f32 %v86
      %v88 = vadd.f32 %v81, %v87
      %89 = vset.pattern.permute.xlu0 7
      %90 = vperm.xlu0 %89, %v37
      %v91 = vpop.permute.xlu0 %90
      %vm92 = vcmp.eq.s32.totalorder %v91, %v39
      %v93 = vsel %vm92, 1, 0
      %v94 = vcvt.s32.f32 %v93
      %v95 = vadd.f32 %v88, %v94
      %96 = vset.pattern.permute.xlu0 8
      %97 = vperm.xlu0 %96, %v37
      %v98 = vpop.permute.xlu0 %97
      %vm99 = vcmp.eq.s32.totalorder %v98, %v39
      %v100 = vsel %vm99, 1, 0
      %v101 = vcvt.s32.f32 %v100
      %v102 = vadd.f32 %v95, %v101
      %103 = vset.pattern.permute.xlu0 9
      %104 = vperm.xlu0 %103, %v37
      %v105 = vpop.permute.xlu0 %104
      %vm106 = vcmp.eq.s32.totalorder %v105, %v39
      %v107 = vsel %vm106, 1, 0
      %v108 = vcvt.s32.f32 %v107
      %v109 = vadd.f32 %v102, %v108
      %110 = vset.pattern.permute.xlu0 10
      %111 = vperm.xlu0 %110, %v37
      %v112 = vpop.permute.xlu0 %111
      %vm113 = vcmp.eq.s32.totalorder %v112, %v39
      %v114 = vsel %vm113, 1, 0
      %v115 = vcvt.s32.f32 %v114
      %v116 = vadd.f32 %v109, %v115
      %117 = vset.pattern.permute.xlu0 11
      %118 = vperm.xlu0 %117, %v37
      %v119 = vpop.permute.xlu0 %118
      %vm120 = vcmp.eq.s32.totalorder %v119, %v39
      %v121 = vsel %vm120, 1, 0
      %v122 = vcvt.s32.f32 %v121
      %v123 = vadd.f32 %v116, %v122
      %124 = vset.pattern.permute.xlu0 12
      %125 = vperm.xlu0 %124, %v37
      %v126 = vpop.permute.xlu0 %125
      %vm127 = vcmp.eq.s32.totalorder %v126, %v39
      %v128 = vsel %vm127, 1, 0
      %v129 = vcvt.s32.f32 %v128
      %v130 = vadd.f32 %v123, %v129
      %131 = vset.pattern.permute.xlu0 13
      %132 = vperm.xlu0 %131, %v37
      %v133 = vpop.permute.xlu0 %132
      %vm134 = vcmp.eq.s32.totalorder %v133, %v39
      %v135 = vsel %vm134, 1, 0
      %v136 = vcvt.s32.f32 %v135
      %v137 = vadd.f32 %v130, %v136
      %138 = vset.pattern.permute.xlu0 14
      %139 = vperm.xlu0 %138, %v37
      %v140 = vpop.permute.xlu0 %139
      %vm141 = vcmp.eq.s32.totalorder %v140, %v39
      %v142 = vsel %vm141, 1, 0
      %v143 = vcvt.s32.f32 %v142
      %v144 = vadd.f32 %v137, %v143
      %145 = vset.pattern.permute.xlu0 15
      %146 = vperm.xlu0 %145, %v37
      %v147 = vpop.permute.xlu0 %146
      %vm148 = vcmp.eq.s32.totalorder %v147, %v39
      %v149 = vsel %vm148, 1, 0
      %v150 = vcvt.s32.f32 %v149
      %v151 = vadd.f32 %v144, %v150
      %v152 = vpack.c.bf16 %v151, %v151
      %v153 = vld [vmem:[%s1] sm:$0xf]
      %v154 = vld [vmem:[%s1 + $0x4] sm:$0xf]
      %v155 = vld [vmem:[%s1 + $0x8] sm:$0xf]
      %v156 = vld [vmem:[%s1 + $0xc] sm:$0xf]
      %v161 = vunpack.c.l.b16 %v153
      %v162 = vunpack.c.l.b16 %v154
      %v163 = vunpack.c.l.b16 %v155
      %v164 = vunpack.c.l.b16 %v156
      %v165 = vpack.c.b16 %v162, %v161
      %v166 = vpack.c.b16 %v164, %v163
      %vm169 = vcmask 261120
      %v171 = vsel %vm169, %v152, 0
      %173 = vmatpush.bf16.msra.mxu0 0
      %174 = vmatpush.bf16.msra.mxu0 0
      %175 = vmatpush.bf16.msra.mxu0 0
      %176 = vmatpush.bf16.msra.mxu0 0
      %177 = vmatpush.bf16.msra.mxu0 0
      %178 = vmatpush.bf16.msra.mxu0 0
      %179 = vmatpush.bf16.msra.mxu0 %v166
      %180 = vmatpush.bf16.msra.mxu0 %v165
      %181 = vmatmul.bf16.gmra.mxu0 %v171
      %v182 = vpop.f32.mrf.mxu0
      %v183 = vadd.f32 0.0, %v182
      %v184 = vpop.f32.mrf.mxu0
      %185 = vdwg.mxu0
      %v186 = vmul.f32 %v183, 0.0625
      %v187 = vld [vmem:[%s2] sm:$0x1]
      %v189 = vperm.slane %v187, 0
      %v191 = vadd.f32 %v186, %v189
      %v192 = vmul.f32 %v191, %v191
      %193 = vadd.xlane.f32.xlu0 %v192
      %v194 = vpop.xlane.xlu0 %193
      %v195 = vadd.f32 %v194, 1e-12
      %v196 = vrsqrt.pop %v195
      %v197 = vmul.f32 %v196, %v195
      %v198 = vmul.f32 %v197, %v196
      %v199 = vmul.f32 0.5, %v198
      %v200 = vsub.f32 1.5, %v199
      %v201 = vmul.f32 %v196, %v200
      %vm202 = vweird.f32 %v195
      %vm203 = vweird.f32 %v196
      %vm204 = vmor %vm202, %vm203
      %v205 = vsel %vm204, %v196, %v201
      %v206 = vmul.f32 %v191, %v205
      %207 = vst [vmem:[#allocation3] sm:$0xff] %v206
    $region29: #{a_call__.1} parent=1 // pred_fallthru
      _
    %v208 = vld [vmem:[#allocation2] sm:$0xff]
    %v209 = vld [vmem:[%s3] sm:$0xff]
    %v210 = vld [vmem:[%s3 + $0x8] sm:$0xff]
    %v211 = vld [vmem:[%s3 + $0x10] sm:$0xff]
    %v212 = vld [vmem:[%s3 + $0x18] sm:$0xff]
    %v213 = vld [vmem:[%s3 + $0x20] sm:$0xff]
    %v214 = vld [vmem:[%s3 + $0x28] sm:$0xff]
    %v215 = vld [vmem:[%s3 + $0x30] sm:$0xff]
    %v216 = vld [vmem:[%s3 + $0x38] sm:$0xff]
    %v217 = vpack.c.bf16 %v209, %v209
    %v218 = vpack.c.bf16 %v210, %v210
    %v219 = vpack.c.bf16 %v211, %v211
    %v220 = vpack.c.bf16 %v212, %v212
    %v221 = vpack.c.bf16 %v213, %v213
    %v222 = vpack.c.bf16 %v214, %v214
    %v223 = vpack.c.bf16 %v215, %v215
    %v224 = vpack.c.bf16 %v216, %v216
    %v225 = vld [vmem:[%s4] sm:$0xf]
    %v226 = vld [vmem:[%s4 + $0x4] sm:$0xf]
    %v227 = vld [vmem:[%s4 + $0x8] sm:$0xf]
    %v228 = vld [vmem:[%s4 + $0xc] sm:$0xf]
    %v229 = vld [vmem:[%s4 + $0x10] sm:$0xf]
    %v230 = vld [vmem:[%s4 + $0x14] sm:$0xf]
    %v231 = vld [vmem:[%s4 + $0x18] sm:$0xf]
    %v232 = vld [vmem:[%s4 + $0x1c] sm:$0xf]
    %v233 = vld [vmem:[%s4 + $0x20] sm:$0xf]
    %v234 = vld [vmem:[%s4 + $0x24] sm:$0xf]
    %v235 = vld [vmem:[%s4 + $0x28] sm:$0xf]
    %v236 = vld [vmem:[%s4 + $0x2c] sm:$0xf]
    %v237 = vld [vmem:[%s4 + $0x30] sm:$0xf]
    %v238 = vld [vmem:[%s4 + $0x34] sm:$0xf]
    %v239 = vld [vmem:[%s4 + $0x38] sm:$0xf]
    %v240 = vld [vmem:[%s4 + $0x3c] sm:$0xf]
    %v241 = vld [vmem:[%s4 + $0x40] sm:$0xf]
    %v242 = vld [vmem:[%s4 + $0x44] sm:$0xf]
    %v243 = vld [vmem:[%s4 + $0x48] sm:$0xf]
    %v244 = vld [vmem:[%s4 + $0x4c] sm:$0xf]
    %v245 = vld [vmem:[%s4 + $0x50] sm:$0xf]
    %v246 = vld [vmem:[%s4 + $0x54] sm:$0xf]
    %v247 = vld [vmem:[%s4 + $0x58] sm:$0xf]
    %v248 = vld [vmem:[%s4 + $0x5c] sm:$0xf]
    %v249 = vld [vmem:[%s4 + $0x60] sm:$0xf]
    %v250 = vld [vmem:[%s4 + $0x64] sm:$0xf]
    %v251 = vld [vmem:[%s4 + $0x68] sm:$0xf]
    %v252 = vld [vmem:[%s4 + $0x6c] sm:$0xf]
    %v253 = vld [vmem:[%s4 + $0x70] sm:$0xf]
    %v254 = vld [vmem:[%s4 + $0x74] sm:$0xf]
    %v255 = vld [vmem:[%s4 + $0x78] sm:$0xf]
    %v256 = vld [vmem:[%s4 + $0x7c] sm:$0xf]
    %v257 = vld [vmem:[%s4 + $0x80] sm:$0xf]
    %v258 = vld [vmem:[%s4 + $0x84] sm:$0xf]
    %v259 = vld [vmem:[%s4 + $0x88] sm:$0xf]
    %v260 = vld [vmem:[%s4 + $0x8c] sm:$0xf]
    %v261 = vld [vmem:[%s4 + $0x90] sm:$0xf]
    %v262 = vld [vmem:[%s4 + $0x94] sm:$0xf]
    %v263 = vld [vmem:[%s4 + $0x98] sm:$0xf]
    %v264 = vld [vmem:[%s4 + $0x9c] sm:$0xf]
    %v265 = vld [vmem:[%s4 + $0xa0] sm:$0xf]
    %v266 = vld [vmem:[%s4 + $0xa4] sm:$0xf]
    %v267 = vld [vmem:[%s4 + $0xa8] sm:$0xf]
    %v268 = vld [vmem:[%s4 + $0xac] sm:$0xf]
    %v269 = vld [vmem:[%s4 + $0xb0] sm:$0xf]
    %v270 = vld [vmem:[%s4 + $0xb4] sm:$0xf]
    %v271 = vld [vmem:[%s4 + $0xb8] sm:$0xf]
    %v272 = vld [vmem:[%s4 + $0xbc] sm:$0xf]
    %v273 = vld [vmem:[%s4 + $0xc0] sm:$0xf]
    %v274 = vld [vmem:[%s4 + $0xc4] sm:$0xf]
    %v275 = vld [vmem:[%s4 + $0xc8] sm:$0xf]
    %v276 = vld [vmem:[%s4 + $0xcc] sm:$0xf]
    %v277 = vld [vmem:[%s4 + $0xd0] sm:$0xf]
    %v278 = vld [vmem:[%s4 + $0xd4] sm:$0xf]
    %v279 = vld [vmem:[%s4 + $0xd8] sm:$0xf]
    %v280 = vld [vmem:[%s4 + $0xdc] sm:$0xf]
    %v281 = vld [vmem:[%s4 + $0xe0] sm:$0xf]
    %v282 = vld [vmem:[%s4 + $0xe4] sm:$0xf]
    %v283 = vld [vmem:[%s4 + $0xe8] sm:$0xf]
    %v284 = vld [vmem:[%s4 + $0xec] sm:$0xf]
    %v285 = vld [vmem:[%s4 + $0xf0] sm:$0xf]
    %v286 = vld [vmem:[%s4 + $0xf4] sm:$0xf]
    %v287 = vld [vmem:[%s4 + $0xf8] sm:$0xf]
    %v288 = vld [vmem:[%s4 + $0xfc] sm:$0xf]
    %v289 = vld [vmem:[%s4 + $0x100] sm:$0xf]
    %v290 = vld [vmem:[%s4 + $0x104] sm:$0xf]
    %v291 = vld [vmem:[%s4 + $0x108] sm:$0xf]
    %v292 = vld [vmem:[%s4 + $0x10c] sm:$0xf]
    %v293 = vld [vmem:[%s4 + $0x110] sm:$0xf]
    %v294 = vld [vmem:[%s4 + $0x114] sm:$0xf]
    %v295 = vld [vmem:[%s4 + $0x118] sm:$0xf]
    %v296 = vld [vmem:[%s4 + $0x11c] sm:$0xf]
    %v297 = vld [vmem:[%s4 + $0x120] sm:$0xf]
    %v298 = vld [vmem:[%s4 + $0x124] sm:$0xf]
    %v299 = vld [vmem:[%s4 + $0x128] sm:$0xf]
    %v300 = vld [vmem:[%s4 + $0x12c] sm:$0xf]
    %v301 = vld [vmem:[%s4 + $0x130] sm:$0xf]
    %v302 = vld [vmem:[%s4 + $0x134] sm:$0xf]
    %v303 = vld [vmem:[%s4 + $0x138] sm:$0xf]
    %v304 = vld [vmem:[%s4 + $0x13c] sm:$0xf]
    %v305 = vld [vmem:[%s4 + $0x140] sm:$0xf]
    %v306 = vld [vmem:[%s4 + $0x144] sm:$0xf]
    %v307 = vld [vmem:[%s4 + $0x148] sm:$0xf]
    %v308 = vld [vmem:[%s4 + $0x14c] sm:$0xf]
    %v309 = vld [vmem:[%s4 + $0x150] sm:$0xf]
    %v310 = vld [vmem:[%s4 + $0x154] sm:$0xf]
    %v311 = vld [vmem:[%s4 + $0x158] sm:$0xf]
    %v312 = vld [vmem:[%s4 + $0x15c] sm:$0xf]
    %v313 = vld [vmem:[%s4 + $0x160] sm:$0xf]
    %v314 = vld [vmem:[%s4 + $0x164] sm:$0xf]
    %v315 = vld [vmem:[%s4 + $0x168] sm:$0xf]
    %v316 = vld [vmem:[%s4 + $0x16c] sm:$0xf]
    %v317 = vld [vmem:[%s4 + $0x170] sm:$0xf]
    %v318 = vld [vmem:[%s4 + $0x174] sm:$0xf]
    %v319 = vld [vmem:[%s4 + $0x178] sm:$0xf]
    %v320 = vld [vmem:[%s4 + $0x17c] sm:$0xf]
    %v321 = vld [vmem:[%s4 + $0x180] sm:$0xf]
    %v322 = vld [vmem:[%s4 + $0x184] sm:$0xf]
    %v323 = vld [vmem:[%s4 + $0x188] sm:$0xf]
    %v324 = vld [vmem:[%s4 + $0x18c] sm:$0xf]
    %v325 = vld [vmem:[%s4 + $0x190] sm:$0xf]
    %v326 = vld [vmem:[%s4 + $0x194] sm:$0xf]
    %v327 = vld [vmem:[%s4 + $0x198] sm:$0xf]
    %v328 = vld [vmem:[%s4 + $0x19c] sm:$0xf]
    %v329 = vld [vmem:[%s4 + $0x1a0] sm:$0xf]
    %v330 = vld [vmem:[%s4 + $0x1a4] sm:$0xf]
    %v331 = vld [vmem:[%s4 + $0x1a8] sm:$0xf]
    %v332 = vld [vmem:[%s4 + $0x1ac] sm:$0xf]
    %v333 = vld [vmem:[%s4 + $0x1b0] sm:$0xf]
    %v334 = vld [vmem:[%s4 + $0x1b4] sm:$0xf]
    %v335 = vld [vmem:[%s4 + $0x1b8] sm:$0xf]
    %v336 = vld [vmem:[%s4 + $0x1bc] sm:$0xf]
    %v337 = vld [vmem:[%s4 + $0x1c0] sm:$0xf]
    %v338 = vld [vmem:[%s4 + $0x1c4] sm:$0xf]
    %v339 = vld [vmem:[%s4 + $0x1c8] sm:$0xf]
    %v340 = vld [vmem:[%s4 + $0x1cc] sm:$0xf]
    %v341 = vld [vmem:[%s4 + $0x1d0] sm:$0xf]
    %v342 = vld [vmem:[%s4 + $0x1d4] sm:$0xf]
    %v343 = vld [vmem:[%s4 + $0x1d8] sm:$0xf]
    %v344 = vld [vmem:[%s4 + $0x1dc] sm:$0xf]
    %v345 = vld [vmem:[%s4 + $0x1e0] sm:$0xf]
    %v346 = vld [vmem:[%s4 + $0x1e4] sm:$0xf]
    %v347 = vld [vmem:[%s4 + $0x1e8] sm:$0xf]
    %v348 = vld [vmem:[%s4 + $0x1ec] sm:$0xf]
    %v349 = vld [vmem:[%s4 + $0x1f0] sm:$0xf]
    %v350 = vld [vmem:[%s4 + $0x1f4] sm:$0xf]
    %v351 = vld [vmem:[%s4 + $0x1f8] sm:$0xf]
    %v352 = vld [vmem:[%s4 + $0x1fc] sm:$0xf]
    %v481 = vunpack.c.l.b16 %v225
    %v482 = vunpack.c.l.b16 %v226
    %v483 = vunpack.c.l.b16 %v227
    %v484 = vunpack.c.l.b16 %v228
    %v485 = vunpack.c.l.b16 %v229
    %v486 = vunpack.c.l.b16 %v230
    %v487 = vunpack.c.l.b16 %v231
    %v488 = vunpack.c.l.b16 %v232
    %v489 = vunpack.c.l.b16 %v233
    %v490 = vunpack.c.l.b16 %v234
    %v491 = vunpack.c.l.b16 %v235
    %v492 = vunpack.c.l.b16 %v236
    %v493 = vunpack.c.l.b16 %v237
    %v494 = vunpack.c.l.b16 %v238
    %v495 = vunpack.c.l.b16 %v239
    %v496 = vunpack.c.l.b16 %v240
    %v497 = vunpack.c.l.b16 %v241
    %v498 = vunpack.c.l.b16 %v242
    %v499 = vunpack.c.l.b16 %v243
    %v500 = vunpack.c.l.b16 %v244
    %v501 = vunpack.c.l.b16 %v245
    %v502 = vunpack.c.l.b16 %v246
    %v503 = vunpack.c.l.b16 %v247
    %v504 = vunpack.c.l.b16 %v248
    %v505 = vunpack.c.l.b16 %v249
    %v506 = vunpack.c.l.b16 %v250
    %v507 = vunpack.c.l.b16 %v251
    %v508 = vunpack.c.l.b16 %v252
    %v509 = vunpack.c.l.b16 %v253
    %v510 = vunpack.c.l.b16 %v254
    %v511 = vunpack.c.l.b16 %v255
    %v512 = vunpack.c.l.b16 %v256
    %v513 = vunpack.c.l.b16 %v257
    %v514 = vunpack.c.l.b16 %v258
    %v515 = vunpack.c.l.b16 %v259
    %v516 = vunpack.c.l.b16 %v260
    %v517 = vunpack.c.l.b16 %v261
    %v518 = vunpack.c.l.b16 %v262
    %v519 = vunpack.c.l.b16 %v263
    %v520 = vunpack.c.l.b16 %v264
    %v521 = vunpack.c.l.b16 %v265
    %v522 = vunpack.c.l.b16 %v266
    %v523 = vunpack.c.l.b16 %v267
    %v524 = vunpack.c.l.b16 %v268
    %v525 = vunpack.c.l.b16 %v269
    %v526 = vunpack.c.l.b16 %v270
    %v527 = vunpack.c.l.b16 %v271
    %v528 = vunpack.c.l.b16 %v272
    %v529 = vunpack.c.l.b16 %v273
    %v530 = vunpack.c.l.b16 %v274
    %v531 = vunpack.c.l.b16 %v275
    %v532 = vunpack.c.l.b16 %v276
    %v533 = vunpack.c.l.b16 %v277
    %v534 = vunpack.c.l.b16 %v278
    %v535 = vunpack.c.l.b16 %v279
    %v536 = vunpack.c.l.b16 %v280
    %v537 = vunpack.c.l.b16 %v281
    %v538 = vunpack.c.l.b16 %v282
    %v539 = vunpack.c.l.b16 %v283
    %v540 = vunpack.c.l.b16 %v284
    %v541 = vunpack.c.l.b16 %v285
    %v542 = vunpack.c.l.b16 %v286
    %v543 = vunpack.c.l.b16 %v287
    %v544 = vunpack.c.l.b16 %v288
    %v545 = vunpack.c.l.b16 %v289
    %v546 = vunpack.c.l.b16 %v290
    %v547 = vunpack.c.l.b16 %v291
    %v548 = vunpack.c.l.b16 %v292
    %v549 = vunpack.c.l.b16 %v293
    %v550 = vunpack.c.l.b16 %v294
    %v551 = vunpack.c.l.b16 %v295
    %v552 = vunpack.c.l.b16 %v296
    %v553 = vunpack.c.l.b16 %v297
    %v554 = vunpack.c.l.b16 %v298
    %v555 = vunpack.c.l.b16 %v299
    %v556 = vunpack.c.l.b16 %v300
    %v557 = vunpack.c.l.b16 %v301
    %v558 = vunpack.c.l.b16 %v302
    %v559 = vunpack.c.l.b16 %v303
    %v560 = vunpack.c.l.b16 %v304
    %v561 = vunpack.c.l.b16 %v305
    %v562 = vunpack.c.l.b16 %v306
    %v563 = vunpack.c.l.b16 %v307
    %v564 = vunpack.c.l.b16 %v308
    %v565 = vunpack.c.l.b16 %v309
    %v566 = vunpack.c.l.b16 %v310
    %v567 = vunpack.c.l.b16 %v311
    %v568 = vunpack.c.l.b16 %v312
    %v569 = vunpack.c.l.b16 %v313
    %v570 = vunpack.c.l.b16 %v314
    %v571 = vunpack.c.l.b16 %v315
    %v572 = vunpack.c.l.b16 %v316
    %v573 = vunpack.c.l.b16 %v317
    %v574 = vunpack.c.l.b16 %v318
    %v575 = vunpack.c.l.b16 %v319
    %v576 = vunpack.c.l.b16 %v320
    %v577 = vunpack.c.l.b16 %v321
    %v578 = vunpack.c.l.b16 %v322
    %v579 = vunpack.c.l.b16 %v323
    %v580 = vunpack.c.l.b16 %v324
    %v581 = vunpack.c.l.b16 %v325
    %v582 = vunpack.c.l.b16 %v326
    %v583 = vunpack.c.l.b16 %v327
    %v584 = vunpack.c.l.b16 %v328
    %v585 = vunpack.c.l.b16 %v329
    %v586 = vunpack.c.l.b16 %v330
    %v587 = vunpack.c.l.b16 %v331
    %v588 = vunpack.c.l.b16 %v332
    %v589 = vunpack.c.l.b16 %v333
    %v590 = vunpack.c.l.b16 %v334
    %v591 = vunpack.c.l.b16 %v335
    %v592 = vunpack.c.l.b16 %v336
    %v593 = vunpack.c.l.b16 %v337
    %v594 = vunpack.c.l.b16 %v338
    %v595 = vunpack.c.l.b16 %v339
    %v596 = vunpack.c.l.b16 %v340
    %v597 = vunpack.c.l.b16 %v341
    %v598 = vunpack.c.l.b16 %v342
    %v599 = vunpack.c.l.b16 %v343
    %v600 = vunpack.c.l.b16 %v344
    %v601 = vunpack.c.l.b16 %v345
    %v602 = vunpack.c.l.b16 %v346
    %v603 = vunpack.c.l.b16 %v347
    %v604 = vunpack.c.l.b16 %v348
    %v605 = vunpack.c.l.b16 %v349
    %v606 = vunpack.c.l.b16 %v350
    %v607 = vunpack.c.l.b16 %v351
    %v608 = vunpack.c.l.b16 %v352
    %v609 = vpack.c.b16 %v482, %v481
    %v610 = vpack.c.b16 %v484, %v483
    %v611 = vpack.c.b16 %v486, %v485
    %v612 = vpack.c.b16 %v488, %v487
    %v613 = vpack.c.b16 %v490, %v489
    %v614 = vpack.c.b16 %v492, %v491
    %v615 = vpack.c.b16 %v494, %v493
    %v616 = vpack.c.b16 %v496, %v495
    %v617 = vpack.c.b16 %v498, %v497
    %v618 = vpack.c.b16 %v500, %v499
    %v619 = vpack.c.b16 %v502, %v501
    %v620 = vpack.c.b16 %v504, %v503
    %v621 = vpack.c.b16 %v506, %v505
    %v622 = vpack.c.b16 %v508, %v507
    %v623 = vpack.c.b16 %v510, %v509
    %v624 = vpack.c.b16 %v512, %v511
    %v625 = vpack.c.b16 %v514, %v513
    %v626 = vpack.c.b16 %v516, %v515
    %v627 = vpack.c.b16 %v518, %v517
    %v628 = vpack.c.b16 %v520, %v519
    %v629 = vpack.c.b16 %v522, %v521
    %v630 = vpack.c.b16 %v524, %v523
    %v631 = vpack.c.b16 %v526, %v525
    %v632 = vpack.c.b16 %v528, %v527
    %v633 = vpack.c.b16 %v530, %v529
    %v634 = vpack.c.b16 %v532, %v531
    %v635 = vpack.c.b16 %v534, %v533
    %v636 = vpack.c.b16 %v536, %v535
    %v637 = vpack.c.b16 %v538, %v537
    %v638 = vpack.c.b16 %v540, %v539
    %v639 = vpack.c.b16 %v542, %v541
    %v640 = vpack.c.b16 %v544, %v543
    %v641 = vpack.c.b16 %v546, %v545
    %v642 = vpack.c.b16 %v548, %v547
    %v643 = vpack.c.b16 %v550, %v549
    %v644 = vpack.c.b16 %v552, %v551
    %v645 = vpack.c.b16 %v554, %v553
    %v646 = vpack.c.b16 %v556, %v555
    %v647 = vpack.c.b16 %v558, %v557
    %v648 = vpack.c.b16 %v560, %v559
    %v649 = vpack.c.b16 %v562, %v561
    %v650 = vpack.c.b16 %v564, %v563
    %v651 = vpack.c.b16 %v566, %v565
    %v652 = vpack.c.b16 %v568, %v567
    %v653 = vpack.c.b16 %v570, %v569
    %v654 = vpack.c.b16 %v572, %v571
    %v655 = vpack.c.b16 %v574, %v573
    %v656 = vpack.c.b16 %v576, %v575
    %v657 = vpack.c.b16 %v578, %v577
    %v658 = vpack.c.b16 %v580, %v579
    %v659 = vpack.c.b16 %v582, %v581
    %v660 = vpack.c.b16 %v584, %v583
    %v661 = vpack.c.b16 %v586, %v585
    %v662 = vpack.c.b16 %v588, %v587
    %v663 = vpack.c.b16 %v590, %v589
    %v664 = vpack.c.b16 %v592, %v591
    %v665 = vpack.c.b16 %v594, %v593
    %v666 = vpack.c.b16 %v596, %v595
    %v667 = vpack.c.b16 %v598, %v597
    %v668 = vpack.c.b16 %v600, %v599
    %v669 = vpack.c.b16 %v602, %v601
    %v670 = vpack.c.b16 %v604, %v603
    %v671 = vpack.c.b16 %v606, %v605
    %v672 = vpack.c.b16 %v608, %v607
    %737 = vmatpush.bf16.msra.mxu0 %v616
    %738 = vmatpush.bf16.msra.mxu0 %v615
    %739 = vmatpush.bf16.msra.mxu0 %v614
    %740 = vmatpush.bf16.msra.mxu0 %v613
    %741 = vmatpush.bf16.msra.mxu0 %v612
    %742 = vmatpush.bf16.msra.mxu0 %v611
    %743 = vmatpush.bf16.msra.mxu0 %v610
    %744 = vmatpush.bf16.msra.mxu0 %v609
    %745 = vmatmul.bf16.gmra.mxu0 %v217
    %v746 = vpop.f32.mrf.mxu0
    %v747 = vadd.f32 0.0, %v746
    %v748 = vpop.f32.mrf.mxu0
    %749 = vdwg.mxu0
    %750 = vmatpush.bf16.msra.mxu0 %v624
    %751 = vmatpush.bf16.msra.mxu0 %v623
    %752 = vmatpush.bf16.msra.mxu0 %v622
    %753 = vmatpush.bf16.msra.mxu0 %v621
    %754 = vmatpush.bf16.msra.mxu0 %v620
    %755 = vmatpush.bf16.msra.mxu0 %v619
    %756 = vmatpush.bf16.msra.mxu0 %v618
    %757 = vmatpush.bf16.msra.mxu0 %v617
    %758 = vmatmul.bf16.gmra.mxu0 %v218
    %v759 = vpop.f32.mrf.mxu0
    %v760 = vadd.f32 %v747, %v759
    %v761 = vpop.f32.mrf.mxu0
    %762 = vdwg.mxu0
    %763 = vmatpush.bf16.msra.mxu0 %v632
    %764 = vmatpush.bf16.msra.mxu0 %v631
    %765 = vmatpush.bf16.msra.mxu0 %v630
    %766 = vmatpush.bf16.msra.mxu0 %v629
    %767 = vmatpush.bf16.msra.mxu0 %v628
    %768 = vmatpush.bf16.msra.mxu0 %v627
    %769 = vmatpush.bf16.msra.mxu0 %v626
    %770 = vmatpush.bf16.msra.mxu0 %v625
    %771 = vmatmul.bf16.gmra.mxu0 %v219
    %v772 = vpop.f32.mrf.mxu0
    %v773 = vadd.f32 %v760, %v772
    %v774 = vpop.f32.mrf.mxu0
    %775 = vdwg.mxu0
    %776 = vmatpush.bf16.msra.mxu0 %v640
    %777 = vmatpush.bf16.msra.mxu0 %v639
    %778 = vmatpush.bf16.msra.mxu0 %v638
    %779 = vmatpush.bf16.msra.mxu0 %v637
    %780 = vmatpush.bf16.msra.mxu0 %v636
    %781 = vmatpush.bf16.msra.mxu0 %v635
    %782 = vmatpush.bf16.msra.mxu0 %v634
    %783 = vmatpush.bf16.msra.mxu0 %v633
    %784 = vmatmul.bf16.gmra.mxu0 %v220
    %v785 = vpop.f32.mrf.mxu0
    %v786 = vadd.f32 %v773, %v785
    %v787 = vpop.f32.mrf.mxu0
    %788 = vdwg.mxu0
    %789 = vmatpush.bf16.msra.mxu0 %v648
    %790 = vmatpush.bf16.msra.mxu0 %v647
    %791 = vmatpush.bf16.msra.mxu0 %v646
    %792 = vmatpush.bf16.msra.mxu0 %v645
    %793 = vmatpush.bf16.msra.mxu0 %v644
    %794 = vmatpush.bf16.msra.mxu0 %v643
    %795 = vmatpush.bf16.msra.mxu0 %v642
    %796 = vmatpush.bf16.msra.mxu0 %v641
    %797 = vmatmul.bf16.gmra.mxu0 %v221
    %v798 = vpop.f32.mrf.mxu0
    %v799 = vadd.f32 %v786, %v798
    %v800 = vpop.f32.mrf.mxu0
    %801 = vdwg.mxu0
    %802 = vmatpush.bf16.msra.mxu0 %v656
    %803 = vmatpush.bf16.msra.mxu0 %v655
    %804 = vmatpush.bf16.msra.mxu0 %v654
    %805 = vmatpush.bf16.msra.mxu0 %v653
    %806 = vmatpush.bf16.msra.mxu0 %v652
    %807 = vmatpush.bf16.msra.mxu0 %v651
    %808 = vmatpush.bf16.msra.mxu0 %v650
    %809 = vmatpush.bf16.msra.mxu0 %v649
    %810 = vmatmul.bf16.gmra.mxu0 %v222
    %v811 = vpop.f32.mrf.mxu0
    %v812 = vadd.f32 %v799, %v811
    %v813 = vpop.f32.mrf.mxu0
    %814 = vdwg.mxu0
    %815 = vmatpush.bf16.msra.mxu0 %v664
    %816 = vmatpush.bf16.msra.mxu0 %v663
    %817 = vmatpush.bf16.msra.mxu0 %v662
    %818 = vmatpush.bf16.msra.mxu0 %v661
    %819 = vmatpush.bf16.msra.mxu0 %v660
    %820 = vmatpush.bf16.msra.mxu0 %v659
    %821 = vmatpush.bf16.msra.mxu0 %v658
    %822 = vmatpush.bf16.msra.mxu0 %v657
    %823 = vmatmul.bf16.gmra.mxu0 %v223
    %v824 = vpop.f32.mrf.mxu0
    %v825 = vadd.f32 %v812, %v824
    %v826 = vpop.f32.mrf.mxu0
    %827 = vdwg.mxu0
    %828 = vmatpush.bf16.msra.mxu0 %v672
    %829 = vmatpush.bf16.msra.mxu0 %v671
    %830 = vmatpush.bf16.msra.mxu0 %v670
    %831 = vmatpush.bf16.msra.mxu0 %v669
    %832 = vmatpush.bf16.msra.mxu0 %v668
    %833 = vmatpush.bf16.msra.mxu0 %v667
    %834 = vmatpush.bf16.msra.mxu0 %v666
    %835 = vmatpush.bf16.msra.mxu0 %v665
    %836 = vmatmul.bf16.gmra.mxu0 %v224
    %v837 = vpop.f32.mrf.mxu0
    %v838 = vadd.f32 %v825, %v837
    %v839 = vpop.f32.mrf.mxu0
    %840 = vdwg.mxu0
    %v841 = vadd.f32 %v208, %v838
    %842 = vst [vmem:[#allocation2] sm:$0xff] %v841
    // Predicated region
    $region30: #{a_call__.1} parent=1 // pred_check
      %p843 = pneg %p28
    $region31: #{a_call__.1} parent=1 // pred_check_branch
      %845 = sbr.rel (%p843) target = $region33
    $region32: #{a_call__.1} parent=1 // pred_region
      %v846 = vld [vmem:[#allocation2] sm:$0xff]
      %v847 = vmul.f32 %v846, %v846
      %848 = vadd.xlane.f32.xlu0 %v847
      %v849 = vpop.xlane.xlu0 %848
      %v850 = vadd.f32 %v849, 1e-12
      %v851 = vrsqrt.pop %v850
      %v852 = vmul.f32 %v851, %v850
      %v853 = vmul.f32 %v852, %v851
      %v854 = vmul.f32 0.5, %v853
      %v855 = vsub.f32 1.5, %v854
      %v856 = vmul.f32 %v851, %v855
      %vm857 = vweird.f32 %v850
      %vm858 = vweird.f32 %v851
      %vm859 = vmor %vm857, %vm858
      %v860 = vsel %vm859, %v851, %v856
      %v861 = vmul.f32 %v846, %v860
      %862 = vst [vmem:[#allocation5] sm:$0xff] %v861
    $region33: #{a_call__.1} parent=1 // pred_fallthru
      _
    // Predicated region
    $region34: #{a_call__.1} parent=1 // pred_check
      _
    $region35: #{a_call__.1} parent=1 // pred_check_branch
      %864 = sbr.rel (0) target = $region37
    $region36: #{a_call__.1} parent=1 // pred_region
      %866 = vsyncadd [#allocation4], 0
      %s868 = sshll.u32 [#allocation3], 4
      %s869 = int_to_ptr.vmem [resolvable:$true] %s868
      %s870 = sshll.u32 %s6, 4
      %s871 = int_to_ptr.hbm [resolvable:$true] %s870
      %873 = dma.vmem_to_hbm [thread:$0]  %s869, 128, %s871, [#allocation4]
    $region37: #{a_call__.1} parent=1 // pred_fallthru
      _
    // Predicated region
    $region38: #{a_call__.1} parent=1 // pred_check
      _
    $region39: #{a_call__.1} parent=1 // pred_check_branch
      %875 = sbr.rel (0) target = $region41
    $region40: #{a_call__.1} parent=1 // pred_region
      %877 = vsyncadd [#allocation6], 0
      %s879 = sshll.u32 [#allocation5], 4
      %s880 = int_to_ptr.vmem [resolvable:$true] %s879
      %s881 = sshll.u32 %s7, 4
      %s882 = int_to_ptr.hbm [resolvable:$true] %s881
      %884 = dma.vmem_to_hbm [thread:$0]  %s880, 128, %s882, [#allocation6]
    $region41: #{a_call__.1} parent=1 // pred_fallthru
      _
    // Predicated region
    $region42: #{a_call__.1} parent=1 // pred_check
      _
    $region43: #{a_call__.1} parent=1 // pred_check_branch
      %886 = sbr.rel (0) target = $region45
    $region44: #{a_call__.1} parent=1 // pred_region
      %888 = dma.done [#allocation4], 128
    $region45: #{a_call__.1} parent=1 // pred_fallthru
      _
    // Predicated region
    $region46: #{a_call__.1} parent=1 // pred_check
      _
    $region47: #{a_call__.1} parent=1 // pred_check_branch
      %890 = sbr.rel (0) target = $region49
    $region48: #{a_call__.1} parent=1 // pred_region
      %892 = dma.done [#allocation6], 128
    $region49: #{a_call__.1} parent=1 // pred_fallthru
      _
    %893 = vsyncpa [#allocation4], 1
    %894 = vsyncpa [#allocation6], 1

</llo_original>
